<compile_context>
chip_gen: v7x
topology: tpu7x:2x2x1
jax: 0.10.0
libtpu: 0.0.40
codegen_flags: <defaults>
</compile_context>

<pallas_src>
import functools
import math

import jax
import jax.numpy as jnp
from jax.experimental import pallas as pl
from jax.experimental.pallas import tpu as pltpu


def _gram_kernel(x_ref, a_ref, *, neg_inv_two_sigma_sq, log_inv_trace):
    # x_ref: (TB, N, D) block of batch elements; a_ref: (TB, N, N) Gram block.
    x = x_ref[...].astype(jnp.float32)                            # (TB, N, D)

    # Batched pairwise inner products on the MXU (batch over TB, contract D,
    # no explicit transpose).  HIGHEST keeps the cancellation-prone expansion
    # at full f32 accuracy.
    xx = jax.lax.dot_general(
        x, x,
        dimension_numbers=(((2,), (2,)), ((0,), (0,))),
        preferred_element_type=jnp.float32,
        precision=jax.lax.Precision.HIGHEST,
    )                                                             # (TB, N, N)

    # ||xi - xj||^2 = ||xi||^2 + ||xj||^2 - 2 <xi, xj>
    sq = jnp.sum(x * x, axis=-1, keepdims=True)                   # (TB, N, 1)
    sq_dist = sq + jnp.swapaxes(sq, -1, -2) - 2.0 * xx            # (TB, N, N)

    # Fused scale (negative constant) + clamp (a true RBF exponent is <= 0,
    # so this only absorbs expansion round-off) with the 1/trace == 1/N
    # normalization folded in as a log constant, then a single exp on the EUP.
    expo = jnp.minimum(sq_dist * neg_inv_two_sigma_sq, 0.0) + log_inv_trace
    a_ref[...] = jnp.exp(expo)


def _choose_batch_block(b, n, d):
    """How many Gram matrices to fold into one grid step."""
    # Amortize the per-step fixed cost: target >= 128 rows of work per step.
    tb = max(1, 128 // max(n, 1))
    # Keep double-buffered (TB,N,D) + (TB,N,N) f32 blocks under ~8 MiB
    # (comfortable on v7x's 32 MiB scoped / 64 MiB physical VMEM).
    per_elem_bytes = 4 * (n * d + n * n) * 2
    tb = min(tb, max(1, (8 << 20) // max(per_elem_bytes, 1)))
    tb = min(tb, b)
    # Keep >= 2 blocks on the "parallel" axis so both v7x TensorCores get work.
    if b >= 2:
        tb = min(tb, pl.cdiv(b, 2))
    return max(tb, 1)


def gram_matrix_batched(x, sigma):
    """Batched Gram layers: x (B, N, D) -> A (B, N, N), one pallas_call."""
    b, n, d = x.shape
    tb = _choose_batch_block(b, n, d)
    num_blocks = pl.cdiv(b, tb)
    b_pad = num_blocks * tb
    if b_pad != b:
        # Pad the batch with zero matrices; their (valid) Gram output is
        # sliced off below.
        x = jnp.concatenate([x, jnp.zeros((b_pad - b, n, d), x.dtype)], axis=0)

    kernel = functools.partial(
        _gram_kernel,
        neg_inv_two_sigma_sq=-1.0 / (2.0 * float(sigma) ** 2),
        log_inv_trace=-math.log(float(n)),                        # log(1/N)
    )
    out = pl.pallas_call(
        kernel,
        out_shape=jax.ShapeDtypeStruct((b_pad, n, n), jnp.float32),
        grid=(num_blocks,),
        in_specs=[pl.BlockSpec((tb, n, d), lambda i: (i, 0, 0))],
        out_specs=pl.BlockSpec((tb, n, n), lambda i: (i, 0, 0)),
        compiler_params=pltpu.CompilerParams(
            dimension_semantics=("parallel",)),
    )(x)
    return out[:b]


def gram_matrix(x, sigma):
    """Module-equivalent forward: x (N, D) -> A (N, N)."""
    return gram_matrix_batched(x[None], sigma)[0]


def _gram_matrix_ref(x, sigma):
    """Pure-JAX reference (mirrors the PyTorch module)."""
    diff = x[:, None, :] - x[None, :, :]
    dist = jnp.sqrt(jnp.maximum(jnp.sum(diff * diff, axis=-1), 0.0))
    g = jnp.exp(-(dist ** 2) / (2.0 * sigma ** 2))
    return g / jnp.trace(g)


if __name__ == "__main__":
    key = jax.random.PRNGKey(0)
    sigma = 1.5
    B, N, D = 4, 8, 32            # small shapes consistent with 2-D cdist/trace

    xb = jax.random.normal(key, (B, N, D), dtype=jnp.float32)

    # Batched path: one pallas_call, batch axis blocked across grid steps.
    ab = jax.block_until_ready(gram_matrix_batched(xb, sigma))
    assert ab.shape == (B, N, N)
    for i in range(B):
        assert jnp.allclose(ab[i], _gram_matrix_ref(xb[i], sigma),
                            atol=1e-5, rtol=1e-5), "batched mismatch vs reference"

    # Non-divisible batch (exercises the batch-padding path).
    xb3 = xb[:3]
    ab3 = jax.block_until_ready(gram_matrix_batched(xb3, sigma))
    assert ab3.shape == (3, N, N)
    for i in range(3):
        assert jnp.allclose(ab3[i], _gram_matrix_ref(xb3[i], sigma),
                            atol=1e-5, rtol=1e-5), "padded-batch mismatch vs reference"

    # Module-equivalent single-matrix path.
    x = xb[0]
    a = jax.block_until_ready(gram_matrix(x, sigma))
    assert a.shape == (N, N)
    assert jnp.allclose(a, _gram_matrix_ref(x, sigma),
                        atol=1e-5, rtol=1e-5), "mismatch vs reference"

    print("KERNEL_OK")
</pallas_src>

<mosaic_0001>
module attributes {stable_mosaic.version = 11 : i64} {
  func.func @_gram_kernel(%arg0: i32, %arg1: memref<2x8x32xf32, #tpu.memory_space<vmem>>, %arg2: memref<2x8x8xf32, #tpu.memory_space<vmem>>) attributes {dimension_semantics = [#tpu.dimension_semantics<parallel>], iteration_bounds = array<i64: 2>, scalar_prefetch = 0 : i64, scratch_operands = 0 : i64, tpu.core_type = #tpu.core_type<tc>, window_params = [{transform_indices = @transform_0, window_bounds = array<i64: 2, 8, 32>}, {transform_indices = @transform_1, window_bounds = array<i64: 2, 8, 8>}]} {
    %c0 = arith.constant 0 : index
    %c0_0 = arith.constant 0 : index
    %c0_1 = arith.constant 0 : index
    %0 = vector.load %arg1[%c0, %c0_0, %c0_1] : memref<2x8x32xf32, #tpu.memory_space<vmem>>, vector<2x8x32xf32>
    %cst = arith.constant dense<0.000000e+00> : vector<2x8x8xf32>
    %1 = tpu.matmul %0, %0, %cst {dimension_numbers = #tpu.dot_dimension_numbers<[2], [2], [1], [1], [0, 0, 0, 1, 1, 1], [0], [0]>, precision = #tpu.contract_precision<fp32>} : vector<2x8x32xf32>, vector<2x8x32xf32>, vector<2x8x8xf32> -> vector<2x8x8xf32>
    %2 = arith.mulf %0, %0 : vector<2x8x32xf32>
    %cst_2 = arith.constant dense<0.000000e+00> : vector<2x8xf32>
    %3 = vector.multi_reduction <add>, %2, %cst_2 [2] : vector<2x8x32xf32> to vector<2x8xf32>
    %4 = vector.shape_cast %3 : vector<2x8xf32> to vector<2x8x1xf32>
    %5 = tpu.transpose %4, [0, 2, 1] : vector<2x8x1xf32> -> vector<2x1x8xf32>
    %6 = vector.broadcast %4 : vector<2x8x1xf32> to vector<2x8x8xf32>
    %7 = vector.broadcast %5 : vector<2x1x8xf32> to vector<2x8x8xf32>
    %8 = arith.addf %6, %7 : vector<2x8x8xf32>
    %cst_3 = arith.constant 2.000000e+00 : f32
    %9 = vector.broadcast %cst_3 : f32 to vector<2x8x8xf32>
    %10 = arith.mulf %9, %1 : vector<2x8x8xf32>
    %11 = arith.subf %8, %10 : vector<2x8x8xf32>
    %cst_4 = arith.constant -0.222222224 : f32
    %12 = vector.broadcast %cst_4 : f32 to vector<2x8x8xf32>
    %13 = arith.mulf %11, %12 : vector<2x8x8xf32>
    %cst_5 = arith.constant 0.000000e+00 : f32
    %14 = vector.broadcast %cst_5 : f32 to vector<2x8x8xf32>
    %15 = arith.minimumf %13, %14 : vector<2x8x8xf32>
    %cst_6 = arith.constant -2.07944155 : f32
    %16 = vector.broadcast %cst_6 : f32 to vector<2x8x8xf32>
    %17 = arith.addf %15, %16 : vector<2x8x8xf32>
    %18 = math.exp %17 : vector<2x8x8xf32>
    %c0_7 = arith.constant 0 : index
    %c0_8 = arith.constant 0 : index
    %c0_9 = arith.constant 0 : index
    %19 = vector.load %arg2[%c0_7, %c0_8, %c0_9] : memref<2x8x8xf32, #tpu.memory_space<vmem>>, vector<2x8x8xf32>
    tpu.vector_store %arg2[%c0_7, %c0_8, %c0_9], %18 {strides = array<i32>} : memref<2x8x8xf32, #tpu.memory_space<vmem>>, vector<2x8x8xf32>,
    return
  }
  func.func @transform_0(%arg0: i32) -> (i32, i32, i32) {
    %c0_i32 = arith.constant 0 : i32
    %c0_i32_0 = arith.constant 0 : i32
    %c0_i32_1 = arith.constant 0 : i32
    return %arg0, %c0_i32, %c0_i32_0 : i32, i32, i32
  }
  func.func @transform_1(%arg0: i32) -> (i32, i32, i32) {
    %c0_i32 = arith.constant 0 : i32
    %c0_i32_0 = arith.constant 0 : i32
    %c0_i32_1 = arith.constant 0 : i32
    return %arg0, %c0_i32, %c0_i32_0 : i32, i32, i32
  }
}

</mosaic_0001>

<llo_original>
// kernel: tpu_custom_call.1
$region0: #{tpu_custom_call.1}
  #allocation0 [shape = 'u32[]', space=smem, size = 0x4, offset = 0x4, fixed_abs, tag = 'smem constant byte address 0x4 - core index']
  #allocation1 [shape = 'u32[144,128]{1,0:T(1,128)}', space=vmem, size = 0x12000, scoped, tag = 'internal scratch']
  %s0 = inlined_call_operand.hbm [shape: f32[4,8,32], index: 0, kind: input, shape index: {}]
  %s1 = inlined_call_operand.hbm [shape: f32[4,8,8], index: 1, kind: output, shape index: {}]
  %s2 = sld [smem:[#allocation0]]
  $region41: #{tpu_custom_call.1} parent=0
    _
  %s4 = ssub.s32 1, %s2
  %s5 = scalar_select 0, %s4, %s2
  $region1: #{tpu_custom_call.1} parent=0
    #allocation2 [shape = 'u8[16384]{0}', space=vmem, size = 0x4000, scoped, tag = 'input window, operand 0']
    #allocation3 [shape = 's32[2]{0}', space=sflag, size = 0x8, scoped, tag = 'scoped memory for tpu_custom_call.1']
    #allocation4 [shape = 's32[2]{0}', space=sflag, size = 0x8, scoped, tag = 'scoped memory for tpu_custom_call.1']
    #allocation5 [shape = 'u8[16384]{0}', space=vmem, size = 0x4000, scoped, tag = 'output window, operand 0']
    %6 = vsyncpa [#allocation3], 0
    %s7 = scalar_lea.sflag [#allocation3], 1
    %8 = vsyncpa %s7, 0
    %9 = vsyncpa [#allocation4], 0
    %s10 = scalar_lea.sflag [#allocation4], 1
    %11 = vsyncpa %s10, 0
    loop: start=0, step=1, limit=4
    $region2: #{tpu_custom_call.1} parent=1 // loop_pre_header
      _
    $region3: #{tpu_custom_call.1} parent=1 // loop_header
      %s13 = sphi 0, %s17
      %p14 = scmp.ge.s32.totalorder %s13, 4
      %s23 = sphi 0, %s25
      %s26 = sphi 0, %s23
      %s27 = sphi 0, %s26
      %s43 = sphi 0, %s27
      %s49 = sphi 0, %s51
      %s52 = sphi 0, %s49
      %s53 = sphi 0, %s52
      %s69 = sphi 0, %s53
    $region4: #{tpu_custom_call.1} parent=1 // loop_header_branch
      %16 = sbr.rel (%p14) target = $region8
    $region5: #{tpu_custom_call.1} parent=1 // loop_body
      %s18 = ssub.s32 %s13, 1
      %s19 = ssub.s32 %s13, 2
      %s20 = sadd.s32 %s13, 1
      %s21 = ssub.s32 %s13, %s20
      %p22 = scmp.eq.s32.totalorder %s21, 0
      %s24 = sadd.s32 %s23, 1
      %s25 = scalar_select %p22, %s23, %s24
      %p28 = pneg %p22
      %p29 = scmp.eq.s32.totalorder %s13, 1
      %p30 = por %p28, %p29
      %p31 = scmp.ne.s32.totalorder %s23, %s26
      %p32 = scmp.eq.s32.totalorder %s13, 0
      %p33 = por %p31, %p32
      %p34 = scmp.ne.s32.totalorder %s23, %s26
      %p35 = scmp.eq.s32.totalorder %s18, 1
      %p36 = por %p34, %p35
      %p37 = scmp.ne.s32.totalorder %s26, %s27
      %p38 = scmp.eq.s32.totalorder %s18, 0
      %p39 = por %p37, %p38
      %p40 = scmp.ne.s32.totalorder %s26, %s27
      %p41 = scmp.eq.s32.totalorder %s19, 1
      %p42 = por %p40, %p41
      %p44 = scmp.ne.s32.totalorder %s27, %s43
      %p45 = scmp.eq.s32.totalorder %s19, 0
      %p46 = por %p44, %p45
      %s47 = ssub.s32 %s13, %s20
      %p48 = scmp.eq.s32.totalorder %s47, 0
      %s50 = sadd.s32 %s49, 1
      %s51 = scalar_select %p48, %s49, %s50
      %p54 = pneg %p48
      %p55 = scmp.eq.s32.totalorder %s13, 1
      %p56 = por %p54, %p55
      %p57 = scmp.ne.s32.totalorder %s49, %s52
      %p58 = scmp.eq.s32.totalorder %s13, 0
      %p59 = por %p57, %p58
      %p60 = scmp.ne.s32.totalorder %s49, %s52
      %p61 = scmp.eq.s32.totalorder %s18, 1
      %p62 = por %p60, %p61
      %p63 = scmp.ne.s32.totalorder %s52, %s53
      %p64 = scmp.eq.s32.totalorder %s18, 0
      %p65 = por %p63, %p64
      %p66 = scmp.ne.s32.totalorder %s52, %s53
      %p67 = scmp.eq.s32.totalorder %s19, 1
      %p68 = por %p66, %p67
      %p70 = scmp.ne.s32.totalorder %s53, %s69
      %p71 = scmp.eq.s32.totalorder %s19, 0
      %p72 = por %p70, %p71
      %p73 = scmp.le.s32.totalorder 1, %s13
      %p74 = scmp.lt.s32.totalorder %s13, 3
      %p75 = pnand %p73, %p74
      %p76 = pneg %p75
      // Predicated region
      $region9: #{tpu_custom_call.1} parent=5 // pred_check
        _
      $region10: #{tpu_custom_call.1} parent=5 // pred_check_branch
        %78 = sbr.rel (%p75) target = $region12
      $region11: #{tpu_custom_call.1} parent=5 // pred_region
        %s79 = ssub.s32 %s13, 1
      $region12: #{tpu_custom_call.1} parent=5 // pred_fallthru
        _
      %p80 = scmp.lt.s32.totalorder %s13, 2
      // Predicated region
      $region13: #{tpu_custom_call.1} parent=5 // pred_check
        %p81 = pneg %p80
      $region14: #{tpu_custom_call.1} parent=5 // pred_check_branch
        %83 = sbr.rel (%p81) target = $region16
      $region15: #{tpu_custom_call.1} parent=5 // pred_region
        // Predicated region
        $region17: #{tpu_custom_call.1} parent=15 // pred_check
          %p84 = pneg %p33
        $region18: #{tpu_custom_call.1} parent=15 // pred_check_branch
          %86 = sbr.rel (%p84) target = $region20
        $region19: #{tpu_custom_call.1} parent=15 // pred_region
          %s87 = sand.u32 %s23, 1
          %s88 = scalar_lea.sflag [#allocation3], %s87
          %s89 = sand.u32 %s23, 1
          %s90 = smul.addr %s89, 16
          %s91 = scalar_lea.vmem [#allocation2], %s90
          %s92 = smul.u32 2, %s13
          %s94 = ssub.s32 256, 256
          %95 = vsyncadd %s88, %s94
          %s96 = smul.addr %s92, 128
          %s97 = scalar_lea.hbm %s0, %s96
          %s98 = sshll.u32 %s91, 4
          %s99 = int_to_ptr.vmem [resolvable:$true] %s98
          %104 = dma.hbm_to_vmem [thread:$0]  %s97, 256, %s99, %s88, 128, 128, 8
        $region20: #{tpu_custom_call.1} parent=15 // pred_fallthru
          _
      $region16: #{tpu_custom_call.1} parent=5 // pred_fallthru
        _
      %p105 = scmp.le.s32.totalorder 1, %s13
      %p106 = scmp.lt.s32.totalorder %s13, 3
      %p107 = pnand %p105, %p106
      %p108 = pneg %p107
      // Predicated region
      $region21: #{tpu_custom_call.1} parent=5 // pred_check
        _
      $region22: #{tpu_custom_call.1} parent=5 // pred_check_branch
        %110 = sbr.rel (%p107) target = $region24
      $region23: #{tpu_custom_call.1} parent=5 // pred_region
        %s111 = ssub.s32 %s13, 1
        %s112 = sand.u32 %s26, 1
        %s113 = scalar_lea.sflag [#allocation3], %s112
        %s114 = sand.u32 %s26, 1
        %s115 = smul.addr %s114, 16
        %s116 = scalar_lea.vmem [#allocation2], %s115
        // Predicated region
        $region25: #{tpu_custom_call.1} parent=23 // pred_check
          %p117 = pneg %p39
        $region26: #{tpu_custom_call.1} parent=23 // pred_check_branch
          %119 = sbr.rel (%p117) target = $region28
        $region27: #{tpu_custom_call.1} parent=23 // pred_region
          %120 = dma.done %s113, 256
        $region28: #{tpu_custom_call.1} parent=23 // pred_fallthru
          _
        %s121 = sand.u32 %s26, 1
        %s122 = scalar_lea.sflag [#allocation3], %s121
        %s123 = sand.u32 %s26, 1
        %s124 = smul.addr %s123, 16
        %s125 = scalar_lea.vmem [#allocation2], %s124
        %p126 = pneg %p39
        %p127 = pneg %p36
        %p128 = pneg %p65
        %p129 = pneg %p62
        %s130 = sand.u32 %s52, 1
        %s131 = scalar_lea.sflag [#allocation4], %s130
        %s132 = sand.u32 %s52, 1
        %s133 = smul.addr %s132, 16
        %s134 = scalar_lea.vmem [#allocation5], %s133
        %s135 = smul.u32 2, %s18
        %s136 = smul.u32 2, %s18
        %v137 = vld [vmem:[%s116] sm:$0xff]
        %v138 = vld [vmem:[%s116 + $0x8] sm:$0xff]
        %vm139 = vcmask 261120
        %v141 = vsel %vm139, %v137, 0
        %143 = vmatprep.subr.mxu0 0.0
        %v144 = vand.u32 %v141, 4294901760
        %145 = vmatpush1.xpose.msra.mxu0 %v144
        %146 = vmatprep.subr.mxu0 0.0
        %147 = vmatpush1.xpose.msra.mxu0 0.0
        %148 = vmatprep.subr.mxu0 0.0
        %149 = vmatpush1.xpose.msra.mxu0 0.0
        %150 = vmatprep.subr.mxu0 0.0
        %151 = vmatpush1.xpose.msra.mxu0 0.0
        %152 = vmatprep.subr.mxu0 0.0
        %153 = vmatpush1.xpose.msra.mxu0 0.0
        %154 = vmatprep.subr.mxu0 0.0
        %155 = vmatpush1.xpose.msra.mxu0 0.0
        %156 = vmatprep.subr.mxu0 0.0
        %157 = vmatpush1.xpose.msra.mxu0 0.0
        %158 = vmatprep.subr.mxu0 0.0
        %159 = vmatpush1.xpose.msra.mxu0 0.0
        %160 = vmatprep.subr.mxu0 0.0
        %161 = vmatpush1.xpose.msra.mxu0 0.0
        %162 = vmatprep.subr.mxu0 0.0
        %163 = vmatpush1.xpose.msra.mxu0 0.0
        %164 = vmatprep.subr.mxu0 0.0
        %165 = vmatpush1.xpose.msra.mxu0 0.0
        %166 = vmatprep.subr.mxu0 0.0
        %167 = vmatpush1.xpose.msra.mxu0 0.0
        %168 = vmatprep.subr.mxu0 0.0
        %169 = vmatpush1.xpose.msra.mxu0 0.0
        %170 = vmatprep.subr.mxu0 0.0
        %171 = vmatpush1.xpose.msra.mxu0 0.0
        %172 = vmatprep.subr.mxu0 0.0
        %173 = vmatpush1.xpose.msra.mxu0 0.0
        %174 = vmatprep.subr.mxu0 0.0
        %175 = vmatpush1.xpose.msra.mxu0 0.0
        %176 = vmatprep.subr.mxu0 0.0
        %177 = vmatpush1.xpose.msra.mxu0 0.0
        %178 = vmatprep.subr.mxu0 0.0
        %179 = vmatpush1.xpose.msra.mxu0 0.0
        %180 = vmatprep.subr.mxu0 0.0
        %181 = vmatpush1.xpose.msra.mxu0 0.0
        %182 = vmatprep.subr.mxu0 0.0
        %183 = vmatpush1.xpose.msra.mxu0 0.0
        %184 = vmatprep.subr.mxu0 0.0
        %185 = vmatpush1.xpose.msra.mxu0 0.0
        %186 = vmatprep.subr.mxu0 0.0
        %187 = vmatpush1.xpose.msra.mxu0 0.0
        %188 = vmatprep.subr.mxu0 0.0
        %189 = vmatpush1.xpose.msra.mxu0 0.0
        %190 = vmatprep.subr.mxu0 0.0
        %191 = vmatpush1.xpose.msra.mxu0 0.0
        %192 = vmatprep.subr.mxu0 0.0
        %193 = vmatpush1.xpose.msra.mxu0 0.0
        %194 = vmatprep.subr.mxu0 0.0
        %195 = vmatpush1.xpose.msra.mxu0 0.0
        %196 = vmatprep.subr.mxu0 0.0
        %197 = vmatpush1.xpose.msra.mxu0 0.0
        %198 = vmatprep.subr.mxu0 0.0
        %199 = vmatpush1.xpose.msra.mxu0 0.0
        %200 = vmatprep.subr.mxu0 0.0
        %201 = vmatpush1.xpose.msra.mxu0 0.0
        %202 = vmatprep.subr.mxu0 0.0
        %203 = vmatpush1.xpose.msra.mxu0 0.0
        %204 = vmatprep.subr.mxu0 0.0
        %205 = vmatpush1.xpose.msra.mxu0 0.0
        %206 = vmatprep.subr.mxu0 0.0
        %207 = vmatpush1.xpose.msra.mxu0 0.0
        %208 = vmatprep.mubr.f32.mxu0 0.0
        %v209 = vand.u32 %v141, 4294901760
        %v210 = vsub.f32 %v141, %v209
        %v211 = vand.u32 %v210, 4294901760
        %v212 = vsub.f32 %v210, %v211
        %v213 = vand.u32 %v212, 4294901760
        %214 = vmatmul.mubr.f32.gmra.mrb[0].mxu0 %v213
        %v215 = vpop.f32.mrb[0].mxu0
        %v216 = vadd.f32 0.0, %v215
        %v217 = vpop.f32.mrb[0].mxu0
        %218 = vdwg.mxu0
        %219 = vmatprep.subr.mxu0 0.0
        %v220 = vand.u32 %v141, 4294901760
        %v221 = vsub.f32 %v141, %v220
        %v222 = vand.u32 %v221, 4294901760
        %v223 = vsub.f32 %v221, %v222
        %v224 = vand.u32 %v223, 4294901760
        %225 = vmatpush1.xpose.msra.mxu0 %v224
        %226 = vmatprep.subr.mxu0 0.0
        %227 = vmatpush1.xpose.msra.mxu0 0.0
        %228 = vmatprep.subr.mxu0 0.0
        %229 = vmatpush1.xpose.msra.mxu0 0.0
        %230 = vmatprep.subr.mxu0 0.0
        %231 = vmatpush1.xpose.msra.mxu0 0.0
        %232 = vmatprep.subr.mxu0 0.0
        %233 = vmatpush1.xpose.msra.mxu0 0.0
        %234 = vmatprep.subr.mxu0 0.0
        %235 = vmatpush1.xpose.msra.mxu0 0.0
        %236 = vmatprep.subr.mxu0 0.0
        %237 = vmatpush1.xpose.msra.mxu0 0.0
        %238 = vmatprep.subr.mxu0 0.0
        %239 = vmatpush1.xpose.msra.mxu0 0.0
        %240 = vmatprep.subr.mxu0 0.0
        %241 = vmatpush1.xpose.msra.mxu0 0.0
        %242 = vmatprep.subr.mxu0 0.0
        %243 = vmatpush1.xpose.msra.mxu0 0.0
        %244 = vmatprep.subr.mxu0 0.0
        %245 = vmatpush1.xpose.msra.mxu0 0.0
        %246 = vmatprep.subr.mxu0 0.0
        %247 = vmatpush1.xpose.msra.mxu0 0.0
        %248 = vmatprep.subr.mxu0 0.0
        %249 = vmatpush1.xpose.msra.mxu0 0.0
        %250 = vmatprep.subr.mxu0 0.0
        %251 = vmatpush1.xpose.msra.mxu0 0.0
        %252 = vmatprep.subr.mxu0 0.0
        %253 = vmatpush1.xpose.msra.mxu0 0.0
        %254 = vmatprep.subr.mxu0 0.0
        %255 = vmatpush1.xpose.msra.mxu0 0.0
        %256 = vmatprep.subr.mxu0 0.0
        %257 = vmatpush1.xpose.msra.mxu0 0.0
        %258 = vmatprep.subr.mxu0 0.0
        %259 = vmatpush1.xpose.msra.mxu0 0.0
        %260 = vmatprep.subr.mxu0 0.0
        %261 = vmatpush1.xpose.msra.mxu0 0.0
        %262 = vmatprep.subr.mxu0 0.0
        %263 = vmatpush1.xpose.msra.mxu0 0.0
        %264 = vmatprep.subr.mxu0 0.0
        %265 = vmatpush1.xpose.msra.mxu0 0.0
        %266 = vmatprep.subr.mxu0 0.0
        %267 = vmatpush1.xpose.msra.mxu0 0.0
        %268 = vmatprep.subr.mxu0 0.0
        %269 = vmatpush1.xpose.msra.mxu0 0.0
        %270 = vmatprep.subr.mxu0 0.0
        %271 = vmatpush1.xpose.msra.mxu0 0.0
        %272 = vmatprep.subr.mxu0 0.0
        %273 = vmatpush1.xpose.msra.mxu0 0.0
        %274 = vmatprep.subr.mxu0 0.0
        %275 = vmatpush1.xpose.msra.mxu0 0.0
        %276 = vmatprep.subr.mxu0 0.0
        %277 = vmatpush1.xpose.msra.mxu0 0.0
        %278 = vmatprep.subr.mxu0 0.0
        %279 = vmatpush1.xpose.msra.mxu0 0.0
        %280 = vmatprep.subr.mxu0 0.0
        %281 = vmatpush1.xpose.msra.mxu0 0.0
        %282 = vmatprep.subr.mxu0 0.0
        %283 = vmatpush1.xpose.msra.mxu0 0.0
        %284 = vmatprep.subr.mxu0 0.0
        %285 = vmatpush1.xpose.msra.mxu0 0.0
        %286 = vmatprep.subr.mxu0 0.0
        %287 = vmatpush1.xpose.msra.mxu0 0.0
        %288 = vmatprep.mubr.f32.mxu0 0.0
        %v289 = vand.u32 %v141, 4294901760
        %290 = vmatmul.mubr.f32.gmra.mrb[0].mxu0 %v289
        %v291 = vpop.f32.mrb[0].mxu0
        %v292 = vadd.f32 %v216, %v291
        %v293 = vpop.f32.mrb[0].mxu0
        %294 = vdwg.mxu0
        %295 = vmatprep.subr.mxu0 0.0
        %v296 = vand.u32 %v141, 4294901760
        %v297 = vsub.f32 %v141, %v296
        %298 = vmatpush1.xpose.msra.mxu0 %v297
        %299 = vmatprep.subr.mxu0 0.0
        %300 = vmatpush1.xpose.msra.mxu0 0.0
        %301 = vmatprep.subr.mxu0 0.0
        %302 = vmatpush1.xpose.msra.mxu0 0.0
        %303 = vmatprep.subr.mxu0 0.0
        %304 = vmatpush1.xpose.msra.mxu0 0.0
        %305 = vmatprep.subr.mxu0 0.0
        %306 = vmatpush1.xpose.msra.mxu0 0.0
        %307 = vmatprep.subr.mxu0 0.0
        %308 = vmatpush1.xpose.msra.mxu0 0.0
        %309 = vmatprep.subr.mxu0 0.0
        %310 = vmatpush1.xpose.msra.mxu0 0.0
        %311 = vmatprep.subr.mxu0 0.0
        %312 = vmatpush1.xpose.msra.mxu0 0.0
        %313 = vmatprep.subr.mxu0 0.0
        %314 = vmatpush1.xpose.msra.mxu0 0.0
        %315 = vmatprep.subr.mxu0 0.0
        %316 = vmatpush1.xpose.msra.mxu0 0.0
        %317 = vmatprep.subr.mxu0 0.0
        %318 = vmatpush1.xpose.msra.mxu0 0.0
        %319 = vmatprep.subr.mxu0 0.0
        %320 = vmatpush1.xpose.msra.mxu0 0.0
        %321 = vmatprep.subr.mxu0 0.0
        %322 = vmatpush1.xpose.msra.mxu0 0.0
        %323 = vmatprep.subr.mxu0 0.0
        %324 = vmatpush1.xpose.msra.mxu0 0.0
        %325 = vmatprep.subr.mxu0 0.0
        %326 = vmatpush1.xpose.msra.mxu0 0.0
        %327 = vmatprep.subr.mxu0 0.0
        %328 = vmatpush1.xpose.msra.mxu0 0.0
        %329 = vmatprep.subr.mxu0 0.0
        %330 = vmatpush1.xpose.msra.mxu0 0.0
        %331 = vmatprep.subr.mxu0 0.0
        %332 = vmatpush1.xpose.msra.mxu0 0.0
        %333 = vmatprep.subr.mxu0 0.0
        %334 = vmatpush1.xpose.msra.mxu0 0.0
        %335 = vmatprep.subr.mxu0 0.0
        %336 = vmatpush1.xpose.msra.mxu0 0.0
        %337 = vmatprep.subr.mxu0 0.0
        %338 = vmatpush1.xpose.msra.mxu0 0.0
        %339 = vmatprep.subr.mxu0 0.0
        %340 = vmatpush1.xpose.msra.mxu0 0.0
        %341 = vmatprep.subr.mxu0 0.0
        %342 = vmatpush1.xpose.msra.mxu0 0.0
        %343 = vmatprep.subr.mxu0 0.0
        %344 = vmatpush1.xpose.msra.mxu0 0.0
        %345 = vmatprep.subr.mxu0 0.0
        %346 = vmatpush1.xpose.msra.mxu0 0.0
        %347 = vmatprep.subr.mxu0 0.0
        %348 = vmatpush1.xpose.msra.mxu0 0.0
        %349 = vmatprep.subr.mxu0 0.0
        %350 = vmatpush1.xpose.msra.mxu0 0.0
        %351 = vmatprep.subr.mxu0 0.0
        %352 = vmatpush1.xpose.msra.mxu0 0.0
        %353 = vmatprep.subr.mxu0 0.0
        %354 = vmatpush1.xpose.msra.mxu0 0.0
        %355 = vmatprep.subr.mxu0 0.0
        %356 = vmatpush1.xpose.msra.mxu0 0.0
        %357 = vmatprep.subr.mxu0 0.0
        %358 = vmatpush1.xpose.msra.mxu0 0.0
        %359 = vmatprep.subr.mxu0 0.0
        %360 = vmatpush1.xpose.msra.mxu0 0.0
        %361 = vmatprep.mubr.f32.mxu0 0.0
        %v362 = vand.u32 %v141, 4294901760
        %v363 = vsub.f32 %v141, %v362
        %364 = vmatmul.mubr.f32.gmra.mrb[0].mxu0 %v363
        %v365 = vpop.f32.mrb[0].mxu0
        %v366 = vadd.f32 %v292, %v365
        %v367 = vpop.f32.mrb[0].mxu0
        %368 = vdwg.mxu0
        %369 = vmatprep.subr.mxu0 0.0
        %v370 = vand.u32 %v141, 4294901760
        %371 = vmatpush1.xpose.msra.mxu0 %v370
        %372 = vmatprep.subr.mxu0 0.0
        %373 = vmatpush1.xpose.msra.mxu0 0.0
        %374 = vmatprep.subr.mxu0 0.0
        %375 = vmatpush1.xpose.msra.mxu0 0.0
        %376 = vmatprep.subr.mxu0 0.0
        %377 = vmatpush1.xpose.msra.mxu0 0.0
        %378 = vmatprep.subr.mxu0 0.0
        %379 = vmatpush1.xpose.msra.mxu0 0.0
        %380 = vmatprep.subr.mxu0 0.0
        %381 = vmatpush1.xpose.msra.mxu0 0.0
        %382 = vmatprep.subr.mxu0 0.0
        %383 = vmatpush1.xpose.msra.mxu0 0.0
        %384 = vmatprep.subr.mxu0 0.0
        %385 = vmatpush1.xpose.msra.mxu0 0.0
        %386 = vmatprep.subr.mxu0 0.0
        %387 = vmatpush1.xpose.msra.mxu0 0.0
        %388 = vmatprep.subr.mxu0 0.0
        %389 = vmatpush1.xpose.msra.mxu0 0.0
        %390 = vmatprep.subr.mxu0 0.0
        %391 = vmatpush1.xpose.msra.mxu0 0.0
        %392 = vmatprep.subr.mxu0 0.0
        %393 = vmatpush1.xpose.msra.mxu0 0.0
        %394 = vmatprep.subr.mxu0 0.0
        %395 = vmatpush1.xpose.msra.mxu0 0.0
        %396 = vmatprep.subr.mxu0 0.0
        %397 = vmatpush1.xpose.msra.mxu0 0.0
        %398 = vmatprep.subr.mxu0 0.0
        %399 = vmatpush1.xpose.msra.mxu0 0.0
        %400 = vmatprep.subr.mxu0 0.0
        %401 = vmatpush1.xpose.msra.mxu0 0.0
        %402 = vmatprep.subr.mxu0 0.0
        %403 = vmatpush1.xpose.msra.mxu0 0.0
        %404 = vmatprep.subr.mxu0 0.0
        %405 = vmatpush1.xpose.msra.mxu0 0.0
        %406 = vmatprep.subr.mxu0 0.0
        %407 = vmatpush1.xpose.msra.mxu0 0.0
        %408 = vmatprep.subr.mxu0 0.0
        %409 = vmatpush1.xpose.msra.mxu0 0.0
        %410 = vmatprep.subr.mxu0 0.0
        %411 = vmatpush1.xpose.msra.mxu0 0.0
        %412 = vmatprep.subr.mxu0 0.0
        %413 = vmatpush1.xpose.msra.mxu0 0.0
        %414 = vmatprep.subr.mxu0 0.0
        %415 = vmatpush1.xpose.msra.mxu0 0.0
        %416 = vmatprep.subr.mxu0 0.0
        %417 = vmatpush1.xpose.msra.mxu0 0.0
        %418 = vmatprep.subr.mxu0 0.0
        %419 = vmatpush1.xpose.msra.mxu0 0.0
        %420 = vmatprep.subr.mxu0 0.0
        %421 = vmatpush1.xpose.msra.mxu0 0.0
        %422 = vmatprep.subr.mxu0 0.0
        %423 = vmatpush1.xpose.msra.mxu0 0.0
        %424 = vmatprep.subr.mxu0 0.0
        %425 = vmatpush1.xpose.msra.mxu0 0.0
        %426 = vmatprep.subr.mxu0 0.0
        %427 = vmatpush1.xpose.msra.mxu0 0.0
        %428 = vmatprep.subr.mxu0 0.0
        %429 = vmatpush1.xpose.msra.mxu0 0.0
        %430 = vmatprep.subr.mxu0 0.0
        %431 = vmatpush1.xpose.msra.mxu0 0.0
        %432 = vmatprep.subr.mxu0 0.0
        %433 = vmatpush1.xpose.msra.mxu0 0.0
        %434 = vmatprep.mubr.f32.mxu0 0.0
        %v435 = vand.u32 %v141, 4294901760
        %v436 = vsub.f32 %v141, %v435
        %v437 = vand.u32 %v436, 4294901760
        %438 = vmatmul.mubr.f32.gmra.mrb[0].mxu0 %v437
        %v439 = vpop.f32.mrb[0].mxu0
        %v440 = vadd.f32 %v366, %v439
        %v441 = vpop.f32.mrb[0].mxu0
        %442 = vdwg.mxu0
        %443 = vmatprep.subr.mxu0 0.0
        %v444 = vand.u32 %v141, 4294901760
        %v445 = vsub.f32 %v141, %v444
        %v446 = vand.u32 %v445, 4294901760
        %447 = vmatpush1.xpose.msra.mxu0 %v446
        %448 = vmatprep.subr.mxu0 0.0
        %449 = vmatpush1.xpose.msra.mxu0 0.0
        %450 = vmatprep.subr.mxu0 0.0
        %451 = vmatpush1.xpose.msra.mxu0 0.0
        %452 = vmatprep.subr.mxu0 0.0
        %453 = vmatpush1.xpose.msra.mxu0 0.0
        %454 = vmatprep.subr.mxu0 0.0
        %455 = vmatpush1.xpose.msra.mxu0 0.0
        %456 = vmatprep.subr.mxu0 0.0
        %457 = vmatpush1.xpose.msra.mxu0 0.0
        %458 = vmatprep.subr.mxu0 0.0
        %459 = vmatpush1.xpose.msra.mxu0 0.0
        %460 = vmatprep.subr.mxu0 0.0
        %461 = vmatpush1.xpose.msra.mxu0 0.0
        %462 = vmatprep.subr.mxu0 0.0
        %463 = vmatpush1.xpose.msra.mxu0 0.0
        %464 = vmatprep.subr.mxu0 0.0
        %465 = vmatpush1.xpose.msra.mxu0 0.0
        %466 = vmatprep.subr.mxu0 0.0
        %467 = vmatpush1.xpose.msra.mxu0 0.0
        %468 = vmatprep.subr.mxu0 0.0
        %469 = vmatpush1.xpose.msra.mxu0 0.0
        %470 = vmatprep.subr.mxu0 0.0
        %471 = vmatpush1.xpose.msra.mxu0 0.0
        %472 = vmatprep.subr.mxu0 0.0
        %473 = vmatpush1.xpose.msra.mxu0 0.0
        %474 = vmatprep.subr.mxu0 0.0
        %475 = vmatpush1.xpose.msra.mxu0 0.0
        %476 = vmatprep.subr.mxu0 0.0
        %477 = vmatpush1.xpose.msra.mxu0 0.0
        %478 = vmatprep.subr.mxu0 0.0
        %479 = vmatpush1.xpose.msra.mxu0 0.0
        %480 = vmatprep.subr.mxu0 0.0
        %481 = vmatpush1.xpose.msra.mxu0 0.0
        %482 = vmatprep.subr.mxu0 0.0
        %483 = vmatpush1.xpose.msra.mxu0 0.0
        %484 = vmatprep.subr.mxu0 0.0
        %485 = vmatpush1.xpose.msra.mxu0 0.0
        %486 = vmatprep.subr.mxu0 0.0
        %487 = vmatpush1.xpose.msra.mxu0 0.0
        %488 = vmatprep.subr.mxu0 0.0
        %489 = vmatpush1.xpose.msra.mxu0 0.0
        %490 = vmatprep.subr.mxu0 0.0
        %491 = vmatpush1.xpose.msra.mxu0 0.0
        %492 = vmatprep.subr.mxu0 0.0
        %493 = vmatpush1.xpose.msra.mxu0 0.0
        %494 = vmatprep.subr.mxu0 0.0
        %495 = vmatpush1.xpose.msra.mxu0 0.0
        %496 = vmatprep.subr.mxu0 0.0
        %497 = vmatpush1.xpose.msra.mxu0 0.0
        %498 = vmatprep.subr.mxu0 0.0
        %499 = vmatpush1.xpose.msra.mxu0 0.0
        %500 = vmatprep.subr.mxu0 0.0
        %501 = vmatpush1.xpose.msra.mxu0 0.0
        %502 = vmatprep.subr.mxu0 0.0
        %503 = vmatpush1.xpose.msra.mxu0 0.0
        %504 = vmatprep.subr.mxu0 0.0
        %505 = vmatpush1.xpose.msra.mxu0 0.0
        %506 = vmatprep.subr.mxu0 0.0
        %507 = vmatpush1.xpose.msra.mxu0 0.0
        %508 = vmatprep.subr.mxu0 0.0
        %509 = vmatpush1.xpose.msra.mxu0 0.0
        %510 = vmatprep.mubr.f32.mxu0 0.0
        %v511 = vand.u32 %v141, 4294901760
        %512 = vmatmul.mubr.f32.gmra.mrb[0].mxu0 %v511
        %v513 = vpop.f32.mrb[0].mxu0
        %v514 = vadd.f32 %v440, %v513
        %v515 = vpop.f32.mrb[0].mxu0
        %516 = vdwg.mxu0
        %517 = vmatprep.subr.mxu0 0.0
        %v518 = vand.u32 %v141, 4294901760
        %519 = vmatpush1.xpose.msra.mxu0 %v518
        %520 = vmatprep.subr.mxu0 0.0
        %521 = vmatpush1.xpose.msra.mxu0 0.0
        %522 = vmatprep.subr.mxu0 0.0
        %523 = vmatpush1.xpose.msra.mxu0 0.0
        %524 = vmatprep.subr.mxu0 0.0
        %525 = vmatpush1.xpose.msra.mxu0 0.0
        %526 = vmatprep.subr.mxu0 0.0
        %527 = vmatpush1.xpose.msra.mxu0 0.0
        %528 = vmatprep.subr.mxu0 0.0
        %529 = vmatpush1.xpose.msra.mxu0 0.0
        %530 = vmatprep.subr.mxu0 0.0
        %531 = vmatpush1.xpose.msra.mxu0 0.0
        %532 = vmatprep.subr.mxu0 0.0
        %533 = vmatpush1.xpose.msra.mxu0 0.0
        %534 = vmatprep.subr.mxu0 0.0
        %535 = vmatpush1.xpose.msra.mxu0 0.0
        %536 = vmatprep.subr.mxu0 0.0
        %537 = vmatpush1.xpose.msra.mxu0 0.0
        %538 = vmatprep.subr.mxu0 0.0
        %539 = vmatpush1.xpose.msra.mxu0 0.0
        %540 = vmatprep.subr.mxu0 0.0
        %541 = vmatpush1.xpose.msra.mxu0 0.0
        %542 = vmatprep.subr.mxu0 0.0
        %543 = vmatpush1.xpose.msra.mxu0 0.0
        %544 = vmatprep.subr.mxu0 0.0
        %545 = vmatpush1.xpose.msra.mxu0 0.0
        %546 = vmatprep.subr.mxu0 0.0
        %547 = vmatpush1.xpose.msra.mxu0 0.0
        %548 = vmatprep.subr.mxu0 0.0
        %549 = vmatpush1.xpose.msra.mxu0 0.0
        %550 = vmatprep.subr.mxu0 0.0
        %551 = vmatpush1.xpose.msra.mxu0 0.0
        %552 = vmatprep.subr.mxu0 0.0
        %553 = vmatpush1.xpose.msra.mxu0 0.0
        %554 = vmatprep.subr.mxu0 0.0
        %555 = vmatpush1.xpose.msra.mxu0 0.0
        %556 = vmatprep.subr.mxu0 0.0
        %557 = vmatpush1.xpose.msra.mxu0 0.0
        %558 = vmatprep.subr.mxu0 0.0
        %559 = vmatpush1.xpose.msra.mxu0 0.0
        %560 = vmatprep.subr.mxu0 0.0
        %561 = vmatpush1.xpose.msra.mxu0 0.0
        %562 = vmatprep.subr.mxu0 0.0
        %563 = vmatpush1.xpose.msra.mxu0 0.0
        %564 = vmatprep.subr.mxu0 0.0
        %565 = vmatpush1.xpose.msra.mxu0 0.0
        %566 = vmatprep.subr.mxu0 0.0
        %567 = vmatpush1.xpose.msra.mxu0 0.0
        %568 = vmatprep.subr.mxu0 0.0
        %569 = vmatpush1.xpose.msra.mxu0 0.0
        %570 = vmatprep.subr.mxu0 0.0
        %571 = vmatpush1.xpose.msra.mxu0 0.0
        %572 = vmatprep.subr.mxu0 0.0
        %573 = vmatpush1.xpose.msra.mxu0 0.0
        %574 = vmatprep.subr.mxu0 0.0
        %575 = vmatpush1.xpose.msra.mxu0 0.0
        %576 = vmatprep.subr.mxu0 0.0
        %577 = vmatpush1.xpose.msra.mxu0 0.0
        %578 = vmatprep.subr.mxu0 0.0
        %579 = vmatpush1.xpose.msra.mxu0 0.0
        %580 = vmatprep.subr.mxu0 0.0
        %581 = vmatpush1.xpose.msra.mxu0 0.0
        %582 = vmatprep.mubr.f32.mxu0 0.0
        %v583 = vand.u32 %v141, 4294901760
        %584 = vmatmul.mubr.f32.gmra.mrb[0].mxu0 %v583
        %v585 = vpop.f32.mrb[0].mxu0
        %v586 = vadd.f32 %v514, %v585
        %v587 = vpop.f32.mrb[0].mxu0
        %588 = vdwg.mxu0
        %v590 = vsel %vm139, %v138, 0
        %592 = vmatprep.subr.mxu0 0.0
        %v593 = vand.u32 %v590, 4294901760
        %594 = vmatpush1.xpose.msra.mxu0 %v593
        %595 = vmatprep.subr.mxu0 0.0
        %596 = vmatpush1.xpose.msra.mxu0 0.0
        %597 = vmatprep.subr.mxu0 0.0
        %598 = vmatpush1.xpose.msra.mxu0 0.0
        %599 = vmatprep.subr.mxu0 0.0
        %600 = vmatpush1.xpose.msra.mxu0 0.0
        %601 = vmatprep.subr.mxu0 0.0
        %602 = vmatpush1.xpose.msra.mxu0 0.0
        %603 = vmatprep.subr.mxu0 0.0
        %604 = vmatpush1.xpose.msra.mxu0 0.0
        %605 = vmatprep.subr.mxu0 0.0
        %606 = vmatpush1.xpose.msra.mxu0 0.0
        %607 = vmatprep.subr.mxu0 0.0
        %608 = vmatpush1.xpose.msra.mxu0 0.0
        %609 = vmatprep.subr.mxu0 0.0
        %610 = vmatpush1.xpose.msra.mxu0 0.0
        %611 = vmatprep.subr.mxu0 0.0
        %612 = vmatpush1.xpose.msra.mxu0 0.0
        %613 = vmatprep.subr.mxu0 0.0
        %614 = vmatpush1.xpose.msra.mxu0 0.0
        %615 = vmatprep.subr.mxu0 0.0
        %616 = vmatpush1.xpose.msra.mxu0 0.0
        %617 = vmatprep.subr.mxu0 0.0
        %618 = vmatpush1.xpose.msra.mxu0 0.0
        %619 = vmatprep.subr.mxu0 0.0
        %620 = vmatpush1.xpose.msra.mxu0 0.0
        %621 = vmatprep.subr.mxu0 0.0
        %622 = vmatpush1.xpose.msra.mxu0 0.0
        %623 = vmatprep.subr.mxu0 0.0
        %624 = vmatpush1.xpose.msra.mxu0 0.0
        %625 = vmatprep.subr.mxu0 0.0
        %626 = vmatpush1.xpose.msra.mxu0 0.0
        %627 = vmatprep.subr.mxu0 0.0
        %628 = vmatpush1.xpose.msra.mxu0 0.0
        %629 = vmatprep.subr.mxu0 0.0
        %630 = vmatpush1.xpose.msra.mxu0 0.0
        %631 = vmatprep.subr.mxu0 0.0
        %632 = vmatpush1.xpose.msra.mxu0 0.0
        %633 = vmatprep.subr.mxu0 0.0
        %634 = vmatpush1.xpose.msra.mxu0 0.0
        %635 = vmatprep.subr.mxu0 0.0
        %636 = vmatpush1.xpose.msra.mxu0 0.0
        %637 = vmatprep.subr.mxu0 0.0
        %638 = vmatpush1.xpose.msra.mxu0 0.0
        %639 = vmatprep.subr.mxu0 0.0
        %640 = vmatpush1.xpose.msra.mxu0 0.0
        %641 = vmatprep.subr.mxu0 0.0
        %642 = vmatpush1.xpose.msra.mxu0 0.0
        %643 = vmatprep.subr.mxu0 0.0
        %644 = vmatpush1.xpose.msra.mxu0 0.0
        %645 = vmatprep.subr.mxu0 0.0
        %646 = vmatpush1.xpose.msra.mxu0 0.0
        %647 = vmatprep.subr.mxu0 0.0
        %648 = vmatpush1.xpose.msra.mxu0 0.0
        %649 = vmatprep.subr.mxu0 0.0
        %650 = vmatpush1.xpose.msra.mxu0 0.0
        %651 = vmatprep.subr.mxu0 0.0
        %652 = vmatpush1.xpose.msra.mxu0 0.0
        %653 = vmatprep.subr.mxu0 0.0
        %654 = vmatpush1.xpose.msra.mxu0 0.0
        %655 = vmatprep.subr.mxu0 0.0
        %656 = vmatpush1.xpose.msra.mxu0 0.0
        %657 = vmatprep.mubr.f32.mxu0 0.0
        %v658 = vand.u32 %v590, 4294901760
        %v659 = vsub.f32 %v590, %v658
        %v660 = vand.u32 %v659, 4294901760
        %v661 = vsub.f32 %v659, %v660
        %v662 = vand.u32 %v661, 4294901760
        %663 = vmatmul.mubr.f32.gmra.mrb[0].mxu0 %v662
        %v664 = vpop.f32.mrb[0].mxu0
        %v665 = vadd.f32 0.0, %v664
        %v666 = vpop.f32.mrb[0].mxu0
        %667 = vdwg.mxu0
        %668 = vmatprep.subr.mxu0 0.0
        %v669 = vand.u32 %v590, 4294901760
        %v670 = vsub.f32 %v590, %v669
        %v671 = vand.u32 %v670, 4294901760
        %v672 = vsub.f32 %v670, %v671
        %v673 = vand.u32 %v672, 4294901760
        %674 = vmatpush1.xpose.msra.mxu0 %v673
        %675 = vmatprep.subr.mxu0 0.0
        %676 = vmatpush1.xpose.msra.mxu0 0.0
        %677 = vmatprep.subr.mxu0 0.0
        %678 = vmatpush1.xpose.msra.mxu0 0.0
        %679 = vmatprep.subr.mxu0 0.0
        %680 = vmatpush1.xpose.msra.mxu0 0.0
        %681 = vmatprep.subr.mxu0 0.0
        %682 = vmatpush1.xpose.msra.mxu0 0.0
        %683 = vmatprep.subr.mxu0 0.0
        %684 = vmatpush1.xpose.msra.mxu0 0.0
        %685 = vmatprep.subr.mxu0 0.0
        %686 = vmatpush1.xpose.msra.mxu0 0.0
        %687 = vmatprep.subr.mxu0 0.0
        %688 = vmatpush1.xpose.msra.mxu0 0.0
        %689 = vmatprep.subr.mxu0 0.0
        %690 = vmatpush1.xpose.msra.mxu0 0.0
        %691 = vmatprep.subr.mxu0 0.0
        %692 = vmatpush1.xpose.msra.mxu0 0.0
        %693 = vmatprep.subr.mxu0 0.0
        %694 = vmatpush1.xpose.msra.mxu0 0.0
        %695 = vmatprep.subr.mxu0 0.0
        %696 = vmatpush1.xpose.msra.mxu0 0.0
        %697 = vmatprep.subr.mxu0 0.0
        %698 = vmatpush1.xpose.msra.mxu0 0.0
        %699 = vmatprep.subr.mxu0 0.0
        %700 = vmatpush1.xpose.msra.mxu0 0.0
        %701 = vmatprep.subr.mxu0 0.0
        %702 = vmatpush1.xpose.msra.mxu0 0.0
        %703 = vmatprep.subr.mxu0 0.0
        %704 = vmatpush1.xpose.msra.mxu0 0.0
        %705 = vmatprep.subr.mxu0 0.0
        %706 = vmatpush1.xpose.msra.mxu0 0.0
        %707 = vmatprep.subr.mxu0 0.0
        %708 = vmatpush1.xpose.msra.mxu0 0.0
        %709 = vmatprep.subr.mxu0 0.0
        %710 = vmatpush1.xpose.msra.mxu0 0.0
        %711 = vmatprep.subr.mxu0 0.0
        %712 = vmatpush1.xpose.msra.mxu0 0.0
        %713 = vmatprep.subr.mxu0 0.0
        %714 = vmatpush1.xpose.msra.mxu0 0.0
        %715 = vmatprep.subr.mxu0 0.0
        %716 = vmatpush1.xpose.msra.mxu0 0.0
        %717 = vmatprep.subr.mxu0 0.0
        %718 = vmatpush1.xpose.msra.mxu0 0.0
        %719 = vmatprep.subr.mxu0 0.0
        %720 = vmatpush1.xpose.msra.mxu0 0.0
        %721 = vmatprep.subr.mxu0 0.0
        %722 = vmatpush1.xpose.msra.mxu0 0.0
        %723 = vmatprep.subr.mxu0 0.0
        %724 = vmatpush1.xpose.msra.mxu0 0.0
        %725 = vmatprep.subr.mxu0 0.0
        %726 = vmatpush1.xpose.msra.mxu0 0.0
        %727 = vmatprep.subr.mxu0 0.0
        %728 = vmatpush1.xpose.msra.mxu0 0.0
        %729 = vmatprep.subr.mxu0 0.0
        %730 = vmatpush1.xpose.msra.mxu0 0.0
        %731 = vmatprep.subr.mxu0 0.0
        %732 = vmatpush1.xpose.msra.mxu0 0.0
        %733 = vmatprep.subr.mxu0 0.0
        %734 = vmatpush1.xpose.msra.mxu0 0.0
        %735 = vmatprep.subr.mxu0 0.0
        %736 = vmatpush1.xpose.msra.mxu0 0.0
        %737 = vmatprep.mubr.f32.mxu0 0.0
        %v738 = vand.u32 %v590, 4294901760
        %739 = vmatmul.mubr.f32.gmra.mrb[0].mxu0 %v738
        %v740 = vpop.f32.mrb[0].mxu0
        %v741 = vadd.f32 %v665, %v740
        %v742 = vpop.f32.mrb[0].mxu0
        %743 = vdwg.mxu0
        %744 = vmatprep.subr.mxu0 0.0
        %v745 = vand.u32 %v590, 4294901760
        %v746 = vsub.f32 %v590, %v745
        %747 = vmatpush1.xpose.msra.mxu0 %v746
        %748 = vmatprep.subr.mxu0 0.0
        %749 = vmatpush1.xpose.msra.mxu0 0.0
        %750 = vmatprep.subr.mxu0 0.0
        %751 = vmatpush1.xpose.msra.mxu0 0.0
        %752 = vmatprep.subr.mxu0 0.0
        %753 = vmatpush1.xpose.msra.mxu0 0.0
        %754 = vmatprep.subr.mxu0 0.0
        %755 = vmatpush1.xpose.msra.mxu0 0.0
        %756 = vmatprep.subr.mxu0 0.0
        %757 = vmatpush1.xpose.msra.mxu0 0.0
        %758 = vmatprep.subr.mxu0 0.0
        %759 = vmatpush1.xpose.msra.mxu0 0.0
        %760 = vmatprep.subr.mxu0 0.0
        %761 = vmatpush1.xpose.msra.mxu0 0.0
        %762 = vmatprep.subr.mxu0 0.0
        %763 = vmatpush1.xpose.msra.mxu0 0.0
        %764 = vmatprep.subr.mxu0 0.0
        %765 = vmatpush1.xpose.msra.mxu0 0.0
        %766 = vmatprep.subr.mxu0 0.0
        %767 = vmatpush1.xpose.msra.mxu0 0.0
        %768 = vmatprep.subr.mxu0 0.0
        %769 = vmatpush1.xpose.msra.mxu0 0.0
        %770 = vmatprep.subr.mxu0 0.0
        %771 = vmatpush1.xpose.msra.mxu0 0.0
        %772 = vmatprep.subr.mxu0 0.0
        %773 = vmatpush1.xpose.msra.mxu0 0.0
        %774 = vmatprep.subr.mxu0 0.0
        %775 = vmatpush1.xpose.msra.mxu0 0.0
        %776 = vmatprep.subr.mxu0 0.0
        %777 = vmatpush1.xpose.msra.mxu0 0.0
        %778 = vmatprep.subr.mxu0 0.0
        %779 = vmatpush1.xpose.msra.mxu0 0.0
        %780 = vmatprep.subr.mxu0 0.0
        %781 = vmatpush1.xpose.msra.mxu0 0.0
        %782 = vmatprep.subr.mxu0 0.0
        %783 = vmatpush1.xpose.msra.mxu0 0.0
        %784 = vmatprep.subr.mxu0 0.0
        %785 = vmatpush1.xpose.msra.mxu0 0.0
        %786 = vmatprep.subr.mxu0 0.0
        %787 = vmatpush1.xpose.msra.mxu0 0.0
        %788 = vmatprep.subr.mxu0 0.0
        %789 = vmatpush1.xpose.msra.mxu0 0.0
        %790 = vmatprep.subr.mxu0 0.0
        %791 = vmatpush1.xpose.msra.mxu0 0.0
        %792 = vmatprep.subr.mxu0 0.0
        %793 = vmatpush1.xpose.msra.mxu0 0.0
        %794 = vmatprep.subr.mxu0 0.0
        %795 = vmatpush1.xpose.msra.mxu0 0.0
        %796 = vmatprep.subr.mxu0 0.0
        %797 = vmatpush1.xpose.msra.mxu0 0.0
        %798 = vmatprep.subr.mxu0 0.0
        %799 = vmatpush1.xpose.msra.mxu0 0.0
        %800 = vmatprep.subr.mxu0 0.0
        %801 = vmatpush1.xpose.msra.mxu0 0.0
        %802 = vmatprep.subr.mxu0 0.0
        %803 = vmatpush1.xpose.msra.mxu0 0.0
        %804 = vmatprep.subr.mxu0 0.0
        %805 = vmatpush1.xpose.msra.mxu0 0.0
        %806 = vmatprep.subr.mxu0 0.0
        %807 = vmatpush1.xpose.msra.mxu0 0.0
        %808 = vmatprep.subr.mxu0 0.0
        %809 = vmatpush1.xpose.msra.mxu0 0.0
        %810 = vmatprep.mubr.f32.mxu0 0.0
        %v811 = vand.u32 %v590, 4294901760
        %v812 = vsub.f32 %v590, %v811
        %813 = vmatmul.mubr.f32.gmra.mrb[0].mxu0 %v812
        %v814 = vpop.f32.mrb[0].mxu0
        %v815 = vadd.f32 %v741, %v814
        %v816 = vpop.f32.mrb[0].mxu0
        %817 = vdwg.mxu0
        %818 = vmatprep.subr.mxu0 0.0
        %v819 = vand.u32 %v590, 4294901760
        %820 = vmatpush1.xpose.msra.mxu0 %v819
        %821 = vmatprep.subr.mxu0 0.0
        %822 = vmatpush1.xpose.msra.mxu0 0.0
        %823 = vmatprep.subr.mxu0 0.0
        %824 = vmatpush1.xpose.msra.mxu0 0.0
        %825 = vmatprep.subr.mxu0 0.0
        %826 = vmatpush1.xpose.msra.mxu0 0.0
        %827 = vmatprep.subr.mxu0 0.0
        %828 = vmatpush1.xpose.msra.mxu0 0.0
        %829 = vmatprep.subr.mxu0 0.0
        %830 = vmatpush1.xpose.msra.mxu0 0.0
        %831 = vmatprep.subr.mxu0 0.0
        %832 = vmatpush1.xpose.msra.mxu0 0.0
        %833 = vmatprep.subr.mxu0 0.0
        %834 = vmatpush1.xpose.msra.mxu0 0.0
        %835 = vmatprep.subr.mxu0 0.0
        %836 = vmatpush1.xpose.msra.mxu0 0.0
        %837 = vmatprep.subr.mxu0 0.0
        %838 = vmatpush1.xpose.msra.mxu0 0.0
        %839 = vmatprep.subr.mxu0 0.0
        %840 = vmatpush1.xpose.msra.mxu0 0.0
        %841 = vmatprep.subr.mxu0 0.0
        %842 = vmatpush1.xpose.msra.mxu0 0.0
        %843 = vmatprep.subr.mxu0 0.0
        %844 = vmatpush1.xpose.msra.mxu0 0.0
        %845 = vmatprep.subr.mxu0 0.0
        %846 = vmatpush1.xpose.msra.mxu0 0.0
        %847 = vmatprep.subr.mxu0 0.0
        %848 = vmatpush1.xpose.msra.mxu0 0.0
        %849 = vmatprep.subr.mxu0 0.0
        %850 = vmatpush1.xpose.msra.mxu0 0.0
        %851 = vmatprep.subr.mxu0 0.0
        %852 = vmatpush1.xpose.msra.mxu0 0.0
        %853 = vmatprep.subr.mxu0 0.0
        %854 = vmatpush1.xpose.msra.mxu0 0.0
        %855 = vmatprep.subr.mxu0 0.0
        %856 = vmatpush1.xpose.msra.mxu0 0.0
        %857 = vmatprep.subr.mxu0 0.0
        %858 = vmatpush1.xpose.msra.mxu0 0.0
        %859 = vmatprep.subr.mxu0 0.0
        %860 = vmatpush1.xpose.msra.mxu0 0.0
        %861 = vmatprep.subr.mxu0 0.0
        %862 = vmatpush1.xpose.msra.mxu0 0.0
        %863 = vmatprep.subr.mxu0 0.0
        %864 = vmatpush1.xpose.msra.mxu0 0.0
        %865 = vmatprep.subr.mxu0 0.0
        %866 = vmatpush1.xpose.msra.mxu0 0.0
        %867 = vmatprep.subr.mxu0 0.0
        %868 = vmatpush1.xpose.msra.mxu0 0.0
        %869 = vmatprep.subr.mxu0 0.0
        %870 = vmatpush1.xpose.msra.mxu0 0.0
        %871 = vmatprep.subr.mxu0 0.0
        %872 = vmatpush1.xpose.msra.mxu0 0.0
        %873 = vmatprep.subr.mxu0 0.0
        %874 = vmatpush1.xpose.msra.mxu0 0.0
        %875 = vmatprep.subr.mxu0 0.0
        %876 = vmatpush1.xpose.msra.mxu0 0.0
        %877 = vmatprep.subr.mxu0 0.0
        %878 = vmatpush1.xpose.msra.mxu0 0.0
        %879 = vmatprep.subr.mxu0 0.0
        %880 = vmatpush1.xpose.msra.mxu0 0.0
        %881 = vmatprep.subr.mxu0 0.0
        %882 = vmatpush1.xpose.msra.mxu0 0.0
        %883 = vmatprep.mubr.f32.mxu0 0.0
        %v884 = vand.u32 %v590, 4294901760
        %v885 = vsub.f32 %v590, %v884
        %v886 = vand.u32 %v885, 4294901760
        %887 = vmatmul.mubr.f32.gmra.mrb[0].mxu0 %v886
        %v888 = vpop.f32.mrb[0].mxu0
        %v889 = vadd.f32 %v815, %v888
        %v890 = vpop.f32.mrb[0].mxu0
        %891 = vdwg.mxu0
        %892 = vmatprep.subr.mxu0 0.0
        %v893 = vand.u32 %v590, 4294901760
        %v894 = vsub.f32 %v590, %v893
        %v895 = vand.u32 %v894, 4294901760
        %896 = vmatpush1.xpose.msra.mxu0 %v895
        %897 = vmatprep.subr.mxu0 0.0
        %898 = vmatpush1.xpose.msra.mxu0 0.0
        %899 = vmatprep.subr.mxu0 0.0
        %900 = vmatpush1.xpose.msra.mxu0 0.0
        %901 = vmatprep.subr.mxu0 0.0
        %902 = vmatpush1.xpose.msra.mxu0 0.0
        %903 = vmatprep.subr.mxu0 0.0
        %904 = vmatpush1.xpose.msra.mxu0 0.0
        %905 = vmatprep.subr.mxu0 0.0
        %906 = vmatpush1.xpose.msra.mxu0 0.0
        %907 = vmatprep.subr.mxu0 0.0
        %908 = vmatpush1.xpose.msra.mxu0 0.0
        %909 = vmatprep.subr.mxu0 0.0
        %910 = vmatpush1.xpose.msra.mxu0 0.0
        %911 = vmatprep.subr.mxu0 0.0
        %912 = vmatpush1.xpose.msra.mxu0 0.0
        %913 = vmatprep.subr.mxu0 0.0
        %914 = vmatpush1.xpose.msra.mxu0 0.0
        %915 = vmatprep.subr.mxu0 0.0
        %916 = vmatpush1.xpose.msra.mxu0 0.0
        %917 = vmatprep.subr.mxu0 0.0
        %918 = vmatpush1.xpose.msra.mxu0 0.0
        %919 = vmatprep.subr.mxu0 0.0
        %920 = vmatpush1.xpose.msra.mxu0 0.0
        %921 = vmatprep.subr.mxu0 0.0
        %922 = vmatpush1.xpose.msra.mxu0 0.0
        %923 = vmatprep.subr.mxu0 0.0
        %924 = vmatpush1.xpose.msra.mxu0 0.0
        %925 = vmatprep.subr.mxu0 0.0
        %926 = vmatpush1.xpose.msra.mxu0 0.0
        %927 = vmatprep.subr.mxu0 0.0
        %928 = vmatpush1.xpose.msra.mxu0 0.0
        %929 = vmatprep.subr.mxu0 0.0
        %930 = vmatpush1.xpose.msra.mxu0 0.0
        %931 = vmatprep.subr.mxu0 0.0
        %932 = vmatpush1.xpose.msra.mxu0 0.0
        %933 = vmatprep.subr.mxu0 0.0
        %934 = vmatpush1.xpose.msra.mxu0 0.0
        %935 = vmatprep.subr.mxu0 0.0
        %936 = vmatpush1.xpose.msra.mxu0 0.0
        %937 = vmatprep.subr.mxu0 0.0
        %938 = vmatpush1.xpose.msra.mxu0 0.0
        %939 = vmatprep.subr.mxu0 0.0
        %940 = vmatpush1.xpose.msra.mxu0 0.0
        %941 = vmatprep.subr.mxu0 0.0
        %942 = vmatpush1.xpose.msra.mxu0 0.0
        %943 = vmatprep.subr.mxu0 0.0
        %944 = vmatpush1.xpose.msra.mxu0 0.0
        %945 = vmatprep.subr.mxu0 0.0
        %946 = vmatpush1.xpose.msra.mxu0 0.0
        %947 = vmatprep.subr.mxu0 0.0
        %948 = vmatpush1.xpose.msra.mxu0 0.0
        %949 = vmatprep.subr.mxu0 0.0
        %950 = vmatpush1.xpose.msra.mxu0 0.0
        %951 = vmatprep.subr.mxu0 0.0
        %952 = vmatpush1.xpose.msra.mxu0 0.0
        %953 = vmatprep.subr.mxu0 0.0
        %954 = vmatpush1.xpose.msra.mxu0 0.0
        %955 = vmatprep.subr.mxu0 0.0
        %956 = vmatpush1.xpose.msra.mxu0 0.0
        %957 = vmatprep.subr.mxu0 0.0
        %958 = vmatpush1.xpose.msra.mxu0 0.0
        %959 = vmatprep.mubr.f32.mxu0 0.0
        %v960 = vand.u32 %v590, 4294901760
        %961 = vmatmul.mubr.f32.gmra.mrb[0].mxu0 %v960
        %v962 = vpop.f32.mrb[0].mxu0
        %v963 = vadd.f32 %v889, %v962
        %v964 = vpop.f32.mrb[0].mxu0
        %965 = vdwg.mxu0
        %966 = vmatprep.subr.mxu0 0.0
        %v967 = vand.u32 %v590, 4294901760
        %968 = vmatpush1.xpose.msra.mxu0 %v967
        %969 = vmatprep.subr.mxu0 0.0
        %970 = vmatpush1.xpose.msra.mxu0 0.0
        %971 = vmatprep.subr.mxu0 0.0
        %972 = vmatpush1.xpose.msra.mxu0 0.0
        %973 = vmatprep.subr.mxu0 0.0
        %974 = vmatpush1.xpose.msra.mxu0 0.0
        %975 = vmatprep.subr.mxu0 0.0
        %976 = vmatpush1.xpose.msra.mxu0 0.0
        %977 = vmatprep.subr.mxu0 0.0
        %978 = vmatpush1.xpose.msra.mxu0 0.0
        %979 = vmatprep.subr.mxu0 0.0
        %980 = vmatpush1.xpose.msra.mxu0 0.0
        %981 = vmatprep.subr.mxu0 0.0
        %982 = vmatpush1.xpose.msra.mxu0 0.0
        %983 = vmatprep.subr.mxu0 0.0
        %984 = vmatpush1.xpose.msra.mxu0 0.0
        %985 = vmatprep.subr.mxu0 0.0
        %986 = vmatpush1.xpose.msra.mxu0 0.0
        %987 = vmatprep.subr.mxu0 0.0
        %988 = vmatpush1.xpose.msra.mxu0 0.0
        %989 = vmatprep.subr.mxu0 0.0
        %990 = vmatpush1.xpose.msra.mxu0 0.0
        %991 = vmatprep.subr.mxu0 0.0
        %992 = vmatpush1.xpose.msra.mxu0 0.0
        %993 = vmatprep.subr.mxu0 0.0
        %994 = vmatpush1.xpose.msra.mxu0 0.0
        %995 = vmatprep.subr.mxu0 0.0
        %996 = vmatpush1.xpose.msra.mxu0 0.0
        %997 = vmatprep.subr.mxu0 0.0
        %998 = vmatpush1.xpose.msra.mxu0 0.0
        %999 = vmatprep.subr.mxu0 0.0
        %1000 = vmatpush1.xpose.msra.mxu0 0.0
        %1001 = vmatprep.subr.mxu0 0.0
        %1002 = vmatpush1.xpose.msra.mxu0 0.0
        %1003 = vmatprep.subr.mxu0 0.0
        %1004 = vmatpush1.xpose.msra.mxu0 0.0
        %1005 = vmatprep.subr.mxu0 0.0
        %1006 = vmatpush1.xpose.msra.mxu0 0.0
        %1007 = vmatprep.subr.mxu0 0.0
        %1008 = vmatpush1.xpose.msra.mxu0 0.0
        %1009 = vmatprep.subr.mxu0 0.0
        %1010 = vmatpush1.xpose.msra.mxu0 0.0
        %1011 = vmatprep.subr.mxu0 0.0
        %1012 = vmatpush1.xpose.msra.mxu0 0.0
        %1013 = vmatprep.subr.mxu0 0.0
        %1014 = vmatpush1.xpose.msra.mxu0 0.0
        %1015 = vmatprep.subr.mxu0 0.0
        %1016 = vmatpush1.xpose.msra.mxu0 0.0
        %1017 = vmatprep.subr.mxu0 0.0
        %1018 = vmatpush1.xpose.msra.mxu0 0.0
        %1019 = vmatprep.subr.mxu0 0.0
        %1020 = vmatpush1.xpose.msra.mxu0 0.0
        %1021 = vmatprep.subr.mxu0 0.0
        %1022 = vmatpush1.xpose.msra.mxu0 0.0
        %1023 = vmatprep.subr.mxu0 0.0
        %1024 = vmatpush1.xpose.msra.mxu0 0.0
        %1025 = vmatprep.subr.mxu0 0.0
        %1026 = vmatpush1.xpose.msra.mxu0 0.0
        %1027 = vmatprep.subr.mxu0 0.0
        %1028 = vmatpush1.xpose.msra.mxu0 0.0
        %1029 = vmatprep.subr.mxu0 0.0
        %1030 = vmatpush1.xpose.msra.mxu0 0.0
        %1031 = vmatprep.mubr.f32.mxu0 0.0
        %v1032 = vand.u32 %v590, 4294901760
        %1033 = vmatmul.mubr.f32.gmra.mrb[0].mxu0 %v1032
        %v1034 = vpop.f32.mrb[0].mxu0
        %v1035 = vadd.f32 %v963, %v1034
        %v1036 = vpop.f32.mrb[0].mxu0
        %1037 = vdwg.mxu0
        %v1038 = vmul.f32 %v137, %v137
        %v1039 = vmul.f32 %v138, %v138
        %v1040 = vsel %vm139, %v1038, 0.0
        %1041 = vadd.xlane.f32.xlu0 %v1040
        %v1042 = vpop.xlane.xlu0 %1041
        %v1043 = vsel %vm139, %v1039, 0.0
        %1044 = vadd.xlane.f32.xlu0 %v1043
        %v1045 = vpop.xlane.xlu0 %1044
        %1046 = vxpose.xlu0.b32.start [1/16] %v1042, 128
        %1047 = vxpose.xlu0.b32.cont [2/16] 0.0, 128
        %1048 = vxpose.xlu0.b32.cont [3/16] 0.0, 128
        %1049 = vxpose.xlu0.b32.cont [4/16] 0.0, 128
        %1050 = vxpose.xlu0.b32.cont [5/16] 0.0, 128
        %1051 = vxpose.xlu0.b32.cont [6/16] 0.0, 128
        %1052 = vxpose.xlu0.b32.cont [7/16] 0.0, 128
        %1053 = vxpose.xlu0.b32.cont [8/16] 0.0, 128
        %1054 = vxpose.xlu0.b32.cont [9/16] 0.0, 128
        %1055 = vxpose.xlu0.b32.cont [10/16] 0.0, 128
        %1056 = vxpose.xlu0.b32.cont [11/16] 0.0, 128
        %1057 = vxpose.xlu0.b32.cont [12/16] 0.0, 128
        %1058 = vxpose.xlu0.b32.cont [13/16] 0.0, 128
        %1059 = vxpose.xlu0.b32.cont [14/16] 0.0, 128
        %1060 = vxpose.xlu0.b32.cont [15/16] 0.0, 128
        %1061 = vxpose.xlu0.b32.end [16/16] 0.0, 128
        %v1062 = vpop.trf.xlu0
        %v1063 = vpop.trf.xlu0
        %v1064 = vpop.trf.xlu0
        %v1065 = vpop.trf.xlu0
        %v1066 = vpop.trf.xlu0
        %v1067 = vpop.trf.xlu0
        %v1068 = vpop.trf.xlu0
        %v1069 = vpop.trf.xlu0
        %v1070 = vpop.trf.xlu0
        %v1071 = vpop.trf.xlu0
        %v1072 = vpop.trf.xlu0
        %v1073 = vpop.trf.xlu0
        %v1074 = vpop.trf.xlu0
        %v1075 = vpop.trf.xlu0
        %v1076 = vpop.trf.xlu0
        %v1077 = vpop.trf.xlu0
        %1078 = vxpose.xlu0.b32.start [1/16] %v1045, 128
        %1079 = vxpose.xlu0.b32.cont [2/16] 0.0, 128
        %1080 = vxpose.xlu0.b32.cont [3/16] 0.0, 128
        %1081 = vxpose.xlu0.b32.cont [4/16] 0.0, 128
        %1082 = vxpose.xlu0.b32.cont [5/16] 0.0, 128
        %1083 = vxpose.xlu0.b32.cont [6/16] 0.0, 128
        %1084 = vxpose.xlu0.b32.cont [7/16] 0.0, 128
        %1085 = vxpose.xlu0.b32.cont [8/16] 0.0, 128
        %1086 = vxpose.xlu0.b32.cont [9/16] 0.0, 128
        %1087 = vxpose.xlu0.b32.cont [10/16] 0.0, 128
        %1088 = vxpose.xlu0.b32.cont [11/16] 0.0, 128
        %1089 = vxpose.xlu0.b32.cont [12/16] 0.0, 128
        %1090 = vxpose.xlu0.b32.cont [13/16] 0.0, 128
        %1091 = vxpose.xlu0.b32.cont [14/16] 0.0, 128
        %1092 = vxpose.xlu0.b32.cont [15/16] 0.0, 128
        %1093 = vxpose.xlu0.b32.end [16/16] 0.0, 128
        %v1094 = vpop.trf.xlu0
        %v1095 = vpop.trf.xlu0
        %v1096 = vpop.trf.xlu0
        %v1097 = vpop.trf.xlu0
        %v1098 = vpop.trf.xlu0
        %v1099 = vpop.trf.xlu0
        %v1100 = vpop.trf.xlu0
        %v1101 = vpop.trf.xlu0
        %v1102 = vpop.trf.xlu0
        %v1103 = vpop.trf.xlu0
        %v1104 = vpop.trf.xlu0
        %v1105 = vpop.trf.xlu0
        %v1106 = vpop.trf.xlu0
        %v1107 = vpop.trf.xlu0
        %v1108 = vpop.trf.xlu0
        %v1109 = vpop.trf.xlu0
        %v1110 = vlaneseq
        %v1111 = vshrl.u32 %v1110, 7
        %v1112 = vsub.s32 0, %v1111
        %v1113 = vrot.slane %v1062, %v1112
        %v1114 = vlaneseq
        %v1115 = vshrl.u32 %v1114, 7
        %v1116 = vsub.s32 0, %v1115
        %v1117 = vrot.slane %v1094, %v1116
        %v1118 = vadd.f32 %v1042, %v1113
        %v1119 = vadd.f32 %v1045, %v1117
        %v1120 = vmul.f32 %v586, 2.0
        %v1121 = vmul.f32 %v1035, 2.0
        %v1122 = vsub.f32 %v1118, %v1120
        %v1123 = vsub.f32 %v1119, %v1121
        %v1124 = vmul.f32 %v1122, -0.22222222
        %v1125 = vmul.f32 %v1123, -0.22222222
        %v1126 = vmin.f32 %v1124, 0.0
        %v1127 = vmin.f32 %v1125, 0.0
        %v1128 = vadd.f32 %v1126, -2.0794415
        %v1129 = vadd.f32 %v1127, -2.0794415
        %v1130 = vmul.f32 %v1128, 1.442695
        %v1131 = vpow.pop %v1130
        %v1132 = vmul.f32 %v1129, 1.442695
        %v1133 = vpow.pop %v1132
        %vm1134 = vcmask 64512
        %1135 = vst.msk [vmem:[%s134] sm:$0xff] %vm1134, %v1131
        %1136 = vst.msk [vmem:[%s134 + $0x8] sm:$0xff] %vm1134, %v1133
        %s1137 = sand.u32 %s52, 1
        %s1138 = scalar_lea.sflag [#allocation4], %s1137
        %s1139 = sand.u32 %s52, 1
        %s1140 = smul.addr %s1139, 16
        %s1141 = scalar_lea.vmem [#allocation5], %s1140
        // Predicated region
        $region29: #{tpu_custom_call.1} parent=23 // pred_check
          %p1142 = pneg %p62
        $region30: #{tpu_custom_call.1} parent=23 // pred_check_branch
          %1144 = sbr.rel (%p1142) target = $region32
        $region31: #{tpu_custom_call.1} parent=23 // pred_region
          %s1145 = smul.u32 2, %s18
          %s1147 = ssub.s32 256, 256
          %1148 = vsyncadd %s1138, %s1147
          %s1149 = smul.addr %s1145, 128
          %s1150 = scalar_lea.hbm %s1, %s1149
          %s1151 = sshll.u32 %s1141, 4
          %s1152 = int_to_ptr.vmem [resolvable:$true] %s1151
          %1157 = dma.vmem_to_hbm [thread:$0]  %s1152, 256, %s1150, %s1138, 128, 128, 8
        $region32: #{tpu_custom_call.1} parent=23 // pred_fallthru
          _
      $region24: #{tpu_custom_call.1} parent=5 // pred_fallthru
        _
      %p1158 = scmp.le.s32.totalorder 2, %s13
      // Predicated region
      $region33: #{tpu_custom_call.1} parent=5 // pred_check
        %p1159 = pneg %p1158
      $region34: #{tpu_custom_call.1} parent=5 // pred_check_branch
        %1161 = sbr.rel (%p1159) target = $region36
      $region35: #{tpu_custom_call.1} parent=5 // pred_region
        %s1162 = ssub.s32 %s13, 2
        // Predicated region
        $region37: #{tpu_custom_call.1} parent=35 // pred_check
          %p1163 = pneg %p68
        $region38: #{tpu_custom_call.1} parent=35 // pred_check_branch
          %1165 = sbr.rel (%p1163) target = $region40
        $region39: #{tpu_custom_call.1} parent=35 // pred_region
          %s1166 = sand.u32 %s53, 1
          %s1167 = scalar_lea.sflag [#allocation4], %s1166
          %s1168 = sand.u32 %s53, 1
          %s1169 = smul.addr %s1168, 16
          %s1170 = scalar_lea.vmem [#allocation5], %s1169
          %1171 = dma.done %s1167, 256
        $region40: #{tpu_custom_call.1} parent=35 // pred_fallthru
          _
      $region36: #{tpu_custom_call.1} parent=5 // pred_fallthru
        _
    $region6: #{tpu_custom_call.1} parent=1 // loop_footer
      %s17 = sadd.s32 1, %s13
    $region7: #{tpu_custom_call.1} parent=1 // loop_footer_branch
      %12 = sbr.rel target = $region3
    $region8: #{tpu_custom_call.1} parent=1 // loop_exit
      _
    %1172 = vsyncpa [#allocation3], 1
    %s1173 = scalar_lea.sflag [#allocation3], 1
    %1174 = vsyncpa %s1173, 1
    %1175 = vsyncpa [#allocation4], 1
    %s1176 = scalar_lea.sflag [#allocation4], 1
    %1177 = vsyncpa %s1176, 1

</llo_original>
